<compile_context>
chip_gen: v6e
topology: v6e:2x2x1
jax: 0.10.0
libtpu: 0.0.40
codegen_flags: <defaults>
</compile_context>

<pallas_src>
import functools

import jax
import jax.numpy as jnp
from jax import lax
from jax.experimental import pallas as pl
from jax.experimental.pallas import tpu as pltpu

N_EMBED    = 384     # C in the reference module
BLOCK_SIZE = 256     # causal-mask capacity (T <= BLOCK_SIZE)
HEAD_SIZE  = 64      # head_size passed to Head()


def _head_kernel(x_ref, wqkv_ref, o_ref, *, head_size, scale):
    """One batch element: fused QKV projection + causal softmax attention.

    x_ref:    (1, T, C)
    wqkv_ref: (C, 3*head_size)   = [Wq | Wk | Wv]
    o_ref:    (1, T, head_size)
    """
    x = x_ref[0].astype(jnp.float32)            # (T, C)
    w = wqkv_ref[...].astype(jnp.float32)       # (C, 3*hs)

    qkv = jnp.dot(x, w, preferred_element_type=jnp.float32)   # (T, 3*hs)
    hs = head_size
    q = qkv[:, :hs] * scale                      # fold 1/sqrt(C) into q
    k = qkv[:, hs:2 * hs]
    v = qkv[:, 2 * hs:]

    s = jnp.dot(q, k.T, preferred_element_type=jnp.float32)   # (T, T)

    T = s.shape[0]
    row = lax.broadcasted_iota(jnp.int32, (T, T), 0)
    col = lax.broadcasted_iota(jnp.int32, (T, T), 1)
    s = jnp.where(col <= row, s, -jnp.inf)       # causal mask (diag always kept)

    m = jnp.max(s, axis=-1, keepdims=True)
    p = jnp.exp(s - m)
    l = jnp.sum(p, axis=-1, keepdims=True)
    p = p * pl.reciprocal(l, approx=True)        # EUP reciprocal, not VALU divide

    # TODO(synk): dropout(p) skipped (inference/eval mode).
    o = jnp.dot(p, v, preferred_element_type=jnp.float32)     # (T, hs)
    o_ref[0] = o.astype(o_ref.dtype)


def head_forward(x, wq, wk, wv):
    """x: (B, T, C); wq/wk/wv: (C, head_size). Returns (B, T, head_size)."""
    B, T, C = x.shape
    hs = wq.shape[1]
    wqkv = jnp.concatenate([wq, wk, wv], axis=1)               # (C, 3*hs)
    scale = float(C) ** -0.5                                   # matches reference C**-0.5

    flops = 2 * B * (T * C * 3 * hs + T * T * hs + T * T * hs)
    bytes_accessed = 4 * (B * T * C + C * 3 * hs + B * T * hs)

    return pl.pallas_call(
        functools.partial(_head_kernel, head_size=hs, scale=scale),
        out_shape=jax.ShapeDtypeStruct((B, T, hs), x.dtype),
        grid=(B,),
        in_specs=[
            pl.BlockSpec((1, T, C), lambda b: (b, 0, 0)),
            pl.BlockSpec((C, 3 * hs), lambda b: (0, 0)),
        ],
        out_specs=pl.BlockSpec((1, T, hs), lambda b: (b, 0, 0)),
        compiler_params=pltpu.CompilerParams(
            dimension_semantics=("parallel",)),
        cost_estimate=pl.CostEstimate(flops=flops,
                                      transcendentals=B * T * T,
                                      bytes_accessed=bytes_accessed),
    )(x, wqkv)


def head_reference(x, wq, wk, wv):
    """Pure-JAX reference mirroring the PyTorch Head.forward (eval mode)."""
    B, T, C = x.shape
    q = x @ wq
    k = x @ wk
    v = x @ wv
    wei = jnp.einsum('btd,bsd->bts', q, k) * (float(C) ** -0.5)
    mask = jnp.tril(jnp.ones((T, T), dtype=bool))
    wei = jnp.where(mask[None], wei, -jnp.inf)
    wei = jax.nn.softmax(wei, axis=-1)
    return wei @ v


if __name__ == "__main__":
    key = jax.random.PRNGKey(0)
    kx, kq, kk, kv = jax.random.split(key, 4)

    B, T = 2, 16
    assert T <= BLOCK_SIZE
    x = jax.random.normal(kx, (B, T, N_EMBED), dtype=jnp.float32)
    wq = (0.02 * jax.random.normal(kq, (N_EMBED, HEAD_SIZE))).astype(jnp.float32)
    wk = (0.02 * jax.random.normal(kk, (N_EMBED, HEAD_SIZE))).astype(jnp.float32)
    wv = (0.02 * jax.random.normal(kv, (N_EMBED, HEAD_SIZE))).astype(jnp.float32)

    out = jax.block_until_ready(head_forward(x, wq, wk, wv))
    assert out.shape == (B, T, HEAD_SIZE)
    assert bool(jnp.all(jnp.isfinite(out)))

    ref = head_reference(x, wq, wk, wv)
    max_err = float(jnp.max(jnp.abs(out - ref)))
    assert bool(jnp.allclose(out, ref, rtol=1e-2, atol=1e-2)), max_err

    print("KERNEL_OK")
</pallas_src>

<mosaic_0001>
module attributes {stable_mosaic.version = 11 : i64} {
  func.func @_head_kernel(%arg0: i32, %arg1: memref<1x16x384xf32, #tpu.memory_space<vmem>>, %arg2: memref<384x192xf32, #tpu.memory_space<vmem>>, %arg3: memref<1x16x64xf32, #tpu.memory_space<vmem>>) attributes {dimension_semantics = [#tpu.dimension_semantics<parallel>], iteration_bounds = array<i64: 2>, scalar_prefetch = 0 : i64, scratch_operands = 0 : i64, tpu.core_type = #tpu.core_type<tc>, window_params = [{transform_indices = @transform_0, window_bounds = array<i64: 1, 16, 384>}, {pipeline_mode = #tpu.pipeline_mode<synchronous>, transform_indices = @transform_1, window_bounds = array<i64: 384, 192>}, {transform_indices = @transform_2, window_bounds = array<i64: 1, 16, 64>}]} {
    %c0 = arith.constant 0 : index
    %c0_0 = arith.constant 0 : index
    %c0_1 = arith.constant 0 : index
    %0 = vector.load %arg1[%c0, %c0_0, %c0_1] : memref<1x16x384xf32, #tpu.memory_space<vmem>>, vector<1x16x384xf32>
    %1 = vector.shape_cast %0 : vector<1x16x384xf32> to vector<16x384xf32>
    %c0_2 = arith.constant 0 : index
    %c0_3 = arith.constant 0 : index
    %2 = vector.load %arg2[%c0_2, %c0_3] : memref<384x192xf32, #tpu.memory_space<vmem>>, vector<384x192xf32>
    %cst = arith.constant dense<0.000000e+00> : vector<16x192xf32>
    %3 = tpu.matmul %1, %2, %cst {dimension_numbers = #tpu.dot_dimension_numbers<[1], [0], [0], [1], [0, 0, 1, 1], [], []>} : vector<16x384xf32>, vector<384x192xf32>, vector<16x192xf32> -> vector<16x192xf32>
    %4 = vector.extract_strided_slice %3 {offsets = [0, 0], sizes = [16, 64], strides = [1, 1]} : vector<16x192xf32> to vector<16x64xf32>
    %cst_4 = arith.constant 0.0510310382 : f32
    %5 = vector.broadcast %cst_4 : f32 to vector<16x64xf32>
    %6 = arith.mulf %4, %5 : vector<16x64xf32>
    %7 = vector.extract_strided_slice %3 {offsets = [0, 64], sizes = [16, 64], strides = [1, 1]} : vector<16x192xf32> to vector<16x64xf32>
    %8 = vector.extract_strided_slice %3 {offsets = [0, 128], sizes = [16, 64], strides = [1, 1]} : vector<16x192xf32> to vector<16x64xf32>
    %9 = tpu.transpose %7, [1, 0] : vector<16x64xf32> -> vector<64x16xf32>
    %cst_5 = arith.constant dense<0.000000e+00> : vector<16x16xf32>
    %10 = tpu.matmul %6, %9, %cst_5 {dimension_numbers = #tpu.dot_dimension_numbers<[1], [0], [0], [1], [0, 0, 1, 1], [], []>} : vector<16x64xf32>, vector<64x16xf32>, vector<16x16xf32> -> vector<16x16xf32>
    %11 = tpu.iota {dimensions = array<i32: 0>} : vector<16x16xi32>
    %12 = tpu.iota {dimensions = array<i32: 1>} : vector<16x16xi32>
    %13 = arith.cmpi sle, %12, %11 : vector<16x16xi32>
    %cst_6 = arith.constant 0xFF800000 : f32
    %14 = vector.broadcast %cst_6 : f32 to vector<16x16xf32>
    %15 = arith.select %13, %10, %14 : vector<16x16xi1>, vector<16x16xf32>
    %cst_7 = arith.constant dense<0xFF800000> : vector<16xf32>
    %16 = vector.multi_reduction <maximumf>, %15, %cst_7 [1] : vector<16x16xf32> to vector<16xf32>
    %17 = vector.shape_cast %16 : vector<16xf32> to vector<16x1xf32>
    %18 = vector.broadcast %17 : vector<16x1xf32> to vector<16x16xf32>
    %19 = arith.subf %15, %18 : vector<16x16xf32>
    %20 = math.exp %19 : vector<16x16xf32>
    %cst_8 = arith.constant dense<0.000000e+00> : vector<16xf32>
    %21 = vector.multi_reduction <add>, %20, %cst_8 [1] : vector<16x16xf32> to vector<16xf32>
    %22 = vector.shape_cast %21 : vector<16xf32> to vector<16x1xf32>
    %23 = tpu.reciprocal %22 {approx = true} : vector<16x1xf32> -> vector<16x1xf32>
    %24 = vector.broadcast %23 : vector<16x1xf32> to vector<16x16xf32>
    %25 = arith.mulf %20, %24 : vector<16x16xf32>
    %cst_9 = arith.constant dense<0.000000e+00> : vector<16x64xf32>
    %26 = tpu.matmul %25, %8, %cst_9 {dimension_numbers = #tpu.dot_dimension_numbers<[1], [0], [0], [1], [0, 0, 1, 1], [], []>} : vector<16x16xf32>, vector<16x64xf32>, vector<16x64xf32> -> vector<16x64xf32>
    %c0_10 = arith.constant 0 : index
    %c0_11 = arith.constant 0 : index
    %c0_12 = arith.constant 0 : index
    %27 = vector.load %arg3[%c0_10, %c0_11, %c0_12] : memref<1x16x64xf32, #tpu.memory_space<vmem>>, vector<1x16x64xf32>
    %28 = vector.shape_cast %27 : vector<1x16x64xf32> to vector<16x64xf32>
    %29 = vector.shape_cast %26 : vector<16x64xf32> to vector<1x16x64xf32>
    tpu.vector_store %arg3[%c0_10, %c0_11, %c0_12], %29 {strides = array<i32>} : memref<1x16x64xf32, #tpu.memory_space<vmem>>, vector<1x16x64xf32>,
    return
  }
  func.func @transform_0(%arg0: i32) -> (i32, i32, i32) {
    %c0_i32 = arith.constant 0 : i32
    %c0_i32_0 = arith.constant 0 : i32
    %c0_i32_1 = arith.constant 0 : i32
    return %arg0, %c0_i32, %c0_i32_0 : i32, i32, i32
  }
  func.func @transform_1(%arg0: i32) -> (i32, i32) {
    %c0_i32 = arith.constant 0 : i32
    %c0_i32_0 = arith.constant 0 : i32
    %c0_i32_1 = arith.constant 0 : i32
    return %c0_i32, %c0_i32_0 : i32, i32
  }
  func.func @transform_2(%arg0: i32) -> (i32, i32, i32) {
    %c0_i32 = arith.constant 0 : i32
    %c0_i32_0 = arith.constant 0 : i32
    %c0_i32_1 = arith.constant 0 : i32
    return %arg0, %c0_i32, %c0_i32_0 : i32, i32, i32
  }
}

</mosaic_0001>

<llo_original>
// kernel: tpu_custom_call.1
$region0: #{tpu_custom_call.1}
  #allocation0 [shape = 'u32[]', space=smem, size = 0x4, offset = 0x4, fixed_abs, tag = 'smem constant byte address 0x4 - core index']
  #allocation1 [shape = 'u32[144,128]{1,0:T(1,128)}', space=vmem, size = 0x12000, scoped, tag = 'internal scratch']
  %s0 = inlined_call_operand.vmem [shape: f32[2,16,384], index: 0, kind: input, shape index: {}]
  %s1 = inlined_call_operand.vmem [shape: f32[384,192], index: 1, kind: input, shape index: {}]
  %s2 = inlined_call_operand.hbm [shape: f32[2,16,64], index: 2, kind: output, shape index: {}]
  %s3 = sld [smem:[#allocation0]]
  $region41: #{tpu_custom_call.1} parent=0
    _
  %s5 = ssub.s32 1, %s3
  %s6 = scalar_select 0, %s5, %s3
  $region1: #{tpu_custom_call.1} parent=0
    #allocation2 [shape = 'u8[16384]{0}', space=vmem, size = 0x4000, scoped, tag = 'output window, operand 0']
    #allocation3 [shape = 's32[2]{0}', space=sflag, size = 0x8, scoped, tag = 'scoped memory for tpu_custom_call.1']
    %7 = vsyncpa [#allocation3], 0
    %s8 = scalar_lea.sflag [#allocation3], 1
    %9 = vsyncpa %s8, 0
    loop: start=0, step=1, limit=4
    $region2: #{tpu_custom_call.1} parent=1 // loop_pre_header
      _
    $region3: #{tpu_custom_call.1} parent=1 // loop_header
      %s11 = sphi 0, %s15
      %p12 = scmp.ge.s32.totalorder %s11, 4
      %s21 = sphi 0, %s23
      %s24 = sphi 0, %s21
      %s25 = sphi 0, %s24
      %s41 = sphi 0, %s25
      %s45 = sphi 0, %s45
      %s47 = sphi 0, %s45
      %s48 = sphi 0, %s47
      %s62 = sphi 0, %s48
      %s68 = sphi 0, %s70
      %s71 = sphi 0, %s68
      %s72 = sphi 0, %s71
      %s88 = sphi 0, %s72
    $region4: #{tpu_custom_call.1} parent=1 // loop_header_branch
      %14 = sbr.rel (%p12) target = $region8
    $region5: #{tpu_custom_call.1} parent=1 // loop_body
      %s16 = ssub.s32 %s11, 1
      %s17 = ssub.s32 %s11, 2
      %s18 = sadd.s32 %s11, 1
      %s19 = ssub.s32 %s11, %s18
      %p20 = scmp.eq.s32.totalorder %s19, 0
      %s22 = sadd.s32 %s21, 1
      %s23 = scalar_select %p20, %s21, %s22
      %p26 = pneg %p20
      %p27 = scmp.eq.s32.totalorder %s11, 1
      %p28 = por %p26, %p27
      %p29 = scmp.ne.s32.totalorder %s21, %s24
      %p30 = scmp.eq.s32.totalorder %s11, 0
      %p31 = por %p29, %p30
      %p32 = scmp.ne.s32.totalorder %s21, %s24
      %p33 = scmp.eq.s32.totalorder %s16, 1
      %p34 = por %p32, %p33
      %p35 = scmp.ne.s32.totalorder %s24, %s25
      %p36 = scmp.eq.s32.totalorder %s16, 0
      %p37 = por %p35, %p36
      %p38 = scmp.ne.s32.totalorder %s24, %s25
      %p39 = scmp.eq.s32.totalorder %s17, 1
      %p40 = por %p38, %p39
      %p42 = scmp.ne.s32.totalorder %s25, %s41
      %p43 = scmp.eq.s32.totalorder %s17, 0
      %p44 = por %p42, %p43
      %s46 = sadd.s32 %s45, 1
      %p49 = scmp.eq.s32.totalorder %s11, 1
      %p50 = scmp.ne.s32.totalorder %s45, %s47
      %p51 = scmp.eq.s32.totalorder %s11, 0
      %p52 = por %p50, %p51
      %p53 = scmp.ne.s32.totalorder %s45, %s47
      %p54 = scmp.eq.s32.totalorder %s16, 1
      %p55 = por %p53, %p54
      %p56 = scmp.ne.s32.totalorder %s47, %s48
      %p57 = scmp.eq.s32.totalorder %s16, 0
      %p58 = por %p56, %p57
      %p59 = scmp.ne.s32.totalorder %s47, %s48
      %p60 = scmp.eq.s32.totalorder %s17, 1
      %p61 = por %p59, %p60
      %p63 = scmp.ne.s32.totalorder %s48, %s62
      %p64 = scmp.eq.s32.totalorder %s17, 0
      %p65 = por %p63, %p64
      %s66 = ssub.s32 %s11, %s18
      %p67 = scmp.eq.s32.totalorder %s66, 0
      %s69 = sadd.s32 %s68, 1
      %s70 = scalar_select %p67, %s68, %s69
      %p73 = pneg %p67
      %p74 = scmp.eq.s32.totalorder %s11, 1
      %p75 = por %p73, %p74
      %p76 = scmp.ne.s32.totalorder %s68, %s71
      %p77 = scmp.eq.s32.totalorder %s11, 0
      %p78 = por %p76, %p77
      %p79 = scmp.ne.s32.totalorder %s68, %s71
      %p80 = scmp.eq.s32.totalorder %s16, 1
      %p81 = por %p79, %p80
      %p82 = scmp.ne.s32.totalorder %s71, %s72
      %p83 = scmp.eq.s32.totalorder %s16, 0
      %p84 = por %p82, %p83
      %p85 = scmp.ne.s32.totalorder %s71, %s72
      %p86 = scmp.eq.s32.totalorder %s17, 1
      %p87 = por %p85, %p86
      %p89 = scmp.ne.s32.totalorder %s72, %s88
      %p90 = scmp.eq.s32.totalorder %s17, 0
      %p91 = por %p89, %p90
      %p92 = scmp.le.s32.totalorder 1, %s11
      %p93 = scmp.lt.s32.totalorder %s11, 3
      %p94 = pnand %p92, %p93
      %p95 = pneg %p94
      // Predicated region
      $region9: #{tpu_custom_call.1} parent=5 // pred_check
        _
      $region10: #{tpu_custom_call.1} parent=5 // pred_check_branch
        %97 = sbr.rel (%p94) target = $region12
      $region11: #{tpu_custom_call.1} parent=5 // pred_region
        %s98 = ssub.s32 %s11, 1
        // Predicated region
        $region13: #{tpu_custom_call.1} parent=11 // pred_check
          %p99 = pneg %p58
        $region14: #{tpu_custom_call.1} parent=11 // pred_check_branch
          %101 = sbr.rel (%p99) target = $region16
        $region15: #{tpu_custom_call.1} parent=11 // pred_region
          _
        $region16: #{tpu_custom_call.1} parent=11 // pred_fallthru
          _
      $region12: #{tpu_custom_call.1} parent=5 // pred_fallthru
        _
      %p102 = scmp.lt.s32.totalorder %s11, 2
      // Predicated region
      $region17: #{tpu_custom_call.1} parent=5 // pred_check
        %p103 = pneg %p102
      $region18: #{tpu_custom_call.1} parent=5 // pred_check_branch
        %105 = sbr.rel (%p103) target = $region20
      $region19: #{tpu_custom_call.1} parent=5 // pred_region
        // Predicated region
        $region21: #{tpu_custom_call.1} parent=19 // pred_check
          %p106 = pneg %p31
        $region22: #{tpu_custom_call.1} parent=19 // pred_check_branch
          %108 = sbr.rel (%p106) target = $region24
        $region23: #{tpu_custom_call.1} parent=19 // pred_region
          %p109 = scmp.lt.s32.totalorder %s11, 1
          %s110 = scalar_select %p109, %s11, 1
          %s111 = smul.addr %s110, 6
          %s112 = smul.addr %s111, 8
          %s113 = scalar_lea.vmem %s0, %s112
        $region24: #{tpu_custom_call.1} parent=19 // pred_fallthru
          _
      $region20: #{tpu_custom_call.1} parent=5 // pred_fallthru
        _
      %p114 = scmp.le.s32.totalorder 1, %s11
      %p115 = scmp.lt.s32.totalorder %s11, 3
      %p116 = pnand %p114, %p115
      %p117 = pneg %p116
      // Predicated region
      $region25: #{tpu_custom_call.1} parent=5 // pred_check
        _
      $region26: #{tpu_custom_call.1} parent=5 // pred_check_branch
        %119 = sbr.rel (%p116) target = $region28
      $region27: #{tpu_custom_call.1} parent=5 // pred_region
        %s120 = ssub.s32 %s11, 1
        %p121 = scmp.lt.s32.totalorder %s16, 1
        %s122 = scalar_select %p121, %s16, 1
        %s123 = smul.addr %s122, 6
        %s124 = smul.addr %s123, 8
        %s125 = scalar_lea.vmem %s0, %s124
        %p126 = pneg %p37
        %p127 = pneg %p34
        %p128 = pneg %p58
        %p129 = pneg %p55
        %p130 = pneg %p84
        %p131 = pneg %p81
        %s132 = sand.u32 %s71, 1
        %s133 = scalar_lea.sflag [#allocation3], %s132
        %s134 = sand.u32 %s71, 1
        %s135 = smul.addr %s134, 16
        %s136 = scalar_lea.vmem [#allocation2], %s135
        %p137 = scmp.lt.s32.totalorder %s16, 1
        %s138 = scalar_select %p137, %s16, 1
        %s139 = smul.addr %s138, 6
        %s140 = smul.addr %s139, 8
        %s141 = scalar_lea.vmem %s0, %s140
        %v142 = vld [vmem:[%s141] sm:$0xff]
        %v143 = vld [vmem:[%s141 + $0x8] sm:$0xff]
        %v144 = vld [vmem:[%s141 + $0x10] sm:$0xff]
        %v145 = vld [vmem:[%s141 + $0x18] sm:$0xff]
        %v146 = vld [vmem:[%s141 + $0x20] sm:$0xff]
        %v147 = vld [vmem:[%s141 + $0x28] sm:$0xff]
        %v148 = vld [vmem:[%s1] sm:$0xff]
        %v149 = vld [vmem:[%s1 + $0x8] sm:$0xff]
        %v150 = vld [vmem:[%s1 + $0x10] sm:$0xff]
        %v151 = vld [vmem:[%s1 + $0x18] sm:$0xff]
        %v152 = vld [vmem:[%s1 + $0x20] sm:$0xff]
        %v153 = vld [vmem:[%s1 + $0x28] sm:$0xff]
        %v154 = vld [vmem:[%s1 + $0x30] sm:$0xff]
        %v155 = vld [vmem:[%s1 + $0x38] sm:$0xff]
        %v156 = vld [vmem:[%s1 + $0x40] sm:$0xff]
        %v157 = vld [vmem:[%s1 + $0x48] sm:$0xff]
        %v158 = vld [vmem:[%s1 + $0x50] sm:$0xff]
        %v159 = vld [vmem:[%s1 + $0x58] sm:$0xff]
        %v160 = vld [vmem:[%s1 + $0x60] sm:$0xff]
        %v161 = vld [vmem:[%s1 + $0x68] sm:$0xff]
        %v162 = vld [vmem:[%s1 + $0x70] sm:$0xff]
        %v163 = vld [vmem:[%s1 + $0x78] sm:$0xff]
        %v164 = vld [vmem:[%s1 + $0x80] sm:$0xff]
        %v165 = vld [vmem:[%s1 + $0x88] sm:$0xff]
        %v166 = vld [vmem:[%s1 + $0x90] sm:$0xff]
        %v167 = vld [vmem:[%s1 + $0x98] sm:$0xff]
        %v168 = vld [vmem:[%s1 + $0xa0] sm:$0xff]
        %v169 = vld [vmem:[%s1 + $0xa8] sm:$0xff]
        %v170 = vld [vmem:[%s1 + $0xb0] sm:$0xff]
        %v171 = vld [vmem:[%s1 + $0xb8] sm:$0xff]
        %v172 = vld [vmem:[%s1 + $0xc0] sm:$0xff]
        %v173 = vld [vmem:[%s1 + $0xc8] sm:$0xff]
        %v174 = vld [vmem:[%s1 + $0xd0] sm:$0xff]
        %v175 = vld [vmem:[%s1 + $0xd8] sm:$0xff]
        %v176 = vld [vmem:[%s1 + $0xe0] sm:$0xff]
        %v177 = vld [vmem:[%s1 + $0xe8] sm:$0xff]
        %v178 = vld [vmem:[%s1 + $0xf0] sm:$0xff]
        %v179 = vld [vmem:[%s1 + $0xf8] sm:$0xff]
        %v180 = vld [vmem:[%s1 + $0x100] sm:$0xff]
        %v181 = vld [vmem:[%s1 + $0x108] sm:$0xff]
        %v182 = vld [vmem:[%s1 + $0x110] sm:$0xff]
        %v183 = vld [vmem:[%s1 + $0x118] sm:$0xff]
        %v184 = vld [vmem:[%s1 + $0x120] sm:$0xff]
        %v185 = vld [vmem:[%s1 + $0x128] sm:$0xff]
        %v186 = vld [vmem:[%s1 + $0x130] sm:$0xff]
        %v187 = vld [vmem:[%s1 + $0x138] sm:$0xff]
        %v188 = vld [vmem:[%s1 + $0x140] sm:$0xff]
        %v189 = vld [vmem:[%s1 + $0x148] sm:$0xff]
        %v190 = vld [vmem:[%s1 + $0x150] sm:$0xff]
        %v191 = vld [vmem:[%s1 + $0x158] sm:$0xff]
        %v192 = vld [vmem:[%s1 + $0x160] sm:$0xff]
        %v193 = vld [vmem:[%s1 + $0x168] sm:$0xff]
        %v194 = vld [vmem:[%s1 + $0x170] sm:$0xff]
        %v195 = vld [vmem:[%s1 + $0x178] sm:$0xff]
        %v196 = vld [vmem:[%s1 + $0x180] sm:$0xff]
        %v197 = vld [vmem:[%s1 + $0x188] sm:$0xff]
        %v198 = vld [vmem:[%s1 + $0x190] sm:$0xff]
        %v199 = vld [vmem:[%s1 + $0x198] sm:$0xff]
        %v200 = vld [vmem:[%s1 + $0x1a0] sm:$0xff]
        %v201 = vld [vmem:[%s1 + $0x1a8] sm:$0xff]
        %v202 = vld [vmem:[%s1 + $0x1b0] sm:$0xff]
        %v203 = vld [vmem:[%s1 + $0x1b8] sm:$0xff]
        %v204 = vld [vmem:[%s1 + $0x1c0] sm:$0xff]
        %v205 = vld [vmem:[%s1 + $0x1c8] sm:$0xff]
        %v206 = vld [vmem:[%s1 + $0x1d0] sm:$0xff]
        %v207 = vld [vmem:[%s1 + $0x1d8] sm:$0xff]
        %v208 = vld [vmem:[%s1 + $0x1e0] sm:$0xff]
        %v209 = vld [vmem:[%s1 + $0x1e8] sm:$0xff]
        %v210 = vld [vmem:[%s1 + $0x1f0] sm:$0xff]
        %v211 = vld [vmem:[%s1 + $0x1f8] sm:$0xff]
        %v212 = vld [vmem:[%s1 + $0x200] sm:$0xff]
        %v213 = vld [vmem:[%s1 + $0x208] sm:$0xff]
        %v214 = vld [vmem:[%s1 + $0x210] sm:$0xff]
        %v215 = vld [vmem:[%s1 + $0x218] sm:$0xff]
        %v216 = vld [vmem:[%s1 + $0x220] sm:$0xff]
        %v217 = vld [vmem:[%s1 + $0x228] sm:$0xff]
        %v218 = vld [vmem:[%s1 + $0x230] sm:$0xff]
        %v219 = vld [vmem:[%s1 + $0x238] sm:$0xff]
        %v220 = vld [vmem:[%s1 + $0x240] sm:$0xff]
        %v221 = vld [vmem:[%s1 + $0x248] sm:$0xff]
        %v222 = vld [vmem:[%s1 + $0x250] sm:$0xff]
        %v223 = vld [vmem:[%s1 + $0x258] sm:$0xff]
        %v224 = vld [vmem:[%s1 + $0x260] sm:$0xff]
        %v225 = vld [vmem:[%s1 + $0x268] sm:$0xff]
        %v226 = vld [vmem:[%s1 + $0x270] sm:$0xff]
        %v227 = vld [vmem:[%s1 + $0x278] sm:$0xff]
        %v228 = vld [vmem:[%s1 + $0x280] sm:$0xff]
        %v229 = vld [vmem:[%s1 + $0x288] sm:$0xff]
        %v230 = vld [vmem:[%s1 + $0x290] sm:$0xff]
        %v231 = vld [vmem:[%s1 + $0x298] sm:$0xff]
        %v232 = vld [vmem:[%s1 + $0x2a0] sm:$0xff]
        %v233 = vld [vmem:[%s1 + $0x2a8] sm:$0xff]
        %v234 = vld [vmem:[%s1 + $0x2b0] sm:$0xff]
        %v235 = vld [vmem:[%s1 + $0x2b8] sm:$0xff]
        %v236 = vld [vmem:[%s1 + $0x2c0] sm:$0xff]
        %v237 = vld [vmem:[%s1 + $0x2c8] sm:$0xff]
        %v238 = vld [vmem:[%s1 + $0x2d0] sm:$0xff]
        %v239 = vld [vmem:[%s1 + $0x2d8] sm:$0xff]
        %v240 = vld [vmem:[%s1 + $0x2e0] sm:$0xff]
        %v241 = vld [vmem:[%s1 + $0x2e8] sm:$0xff]
        %v242 = vld [vmem:[%s1 + $0x2f0] sm:$0xff]
        %v243 = vld [vmem:[%s1 + $0x2f8] sm:$0xff]
        %244 = vmatprep.subr.mxu0 %v179
        %245 = vmatpush1.msra.mxu0 %v178
        %246 = vmatprep.subr.mxu0 %v177
        %247 = vmatpush1.msra.mxu0 %v176
        %248 = vmatprep.subr.mxu0 %v175
        %249 = vmatpush1.msra.mxu0 %v174
        %250 = vmatprep.subr.mxu0 %v173
        %251 = vmatpush1.msra.mxu0 %v172
        %252 = vmatprep.subr.mxu0 %v171
        %253 = vmatpush1.msra.mxu0 %v170
        %254 = vmatprep.subr.mxu0 %v169
        %255 = vmatpush1.msra.mxu0 %v168
        %256 = vmatprep.subr.mxu0 %v167
        %257 = vmatpush1.msra.mxu0 %v166
        %258 = vmatprep.subr.mxu0 %v165
        %259 = vmatpush1.msra.mxu0 %v164
        %260 = vmatprep.subr.mxu0 %v163
        %261 = vmatpush1.msra.mxu0 %v162
        %262 = vmatprep.subr.mxu0 %v161
        %263 = vmatpush1.msra.mxu0 %v160
        %264 = vmatprep.subr.mxu0 %v159
        %265 = vmatpush1.msra.mxu0 %v158
        %266 = vmatprep.subr.mxu0 %v157
        %267 = vmatpush1.msra.mxu0 %v156
        %268 = vmatprep.subr.mxu0 %v155
        %269 = vmatpush1.msra.mxu0 %v154
        %270 = vmatprep.subr.mxu0 %v153
        %271 = vmatpush1.msra.mxu0 %v152
        %272 = vmatprep.subr.mxu0 %v151
        %273 = vmatpush1.msra.mxu0 %v150
        %274 = vmatprep.subr.mxu0 %v149
        %275 = vmatpush1.msra.mxu0 %v148
        %276 = vmatprep.subr.mxu0 %v211
        %277 = vmatpush2.msra.mxu0 %v210
        %278 = vmatprep.subr.mxu0 %v209
        %279 = vmatpush2.msra.mxu0 %v208
        %280 = vmatprep.subr.mxu0 %v207
        %281 = vmatpush2.msra.mxu0 %v206
        %282 = vmatprep.subr.mxu0 %v205
        %283 = vmatpush2.msra.mxu0 %v204
        %284 = vmatprep.subr.mxu0 %v203
        %285 = vmatpush2.msra.mxu0 %v202
        %286 = vmatprep.subr.mxu0 %v201
        %287 = vmatpush2.msra.mxu0 %v200
        %288 = vmatprep.subr.mxu0 %v199
        %289 = vmatpush2.msra.mxu0 %v198
        %290 = vmatprep.subr.mxu0 %v197
        %291 = vmatpush2.msra.mxu0 %v196
        %292 = vmatprep.subr.mxu0 %v195
        %293 = vmatpush2.msra.mxu0 %v194
        %294 = vmatprep.subr.mxu0 %v193
        %295 = vmatpush2.msra.mxu0 %v192
        %296 = vmatprep.subr.mxu0 %v191
        %297 = vmatpush2.msra.mxu0 %v190
        %298 = vmatprep.subr.mxu0 %v189
        %299 = vmatpush2.msra.mxu0 %v188
        %300 = vmatprep.subr.mxu0 %v187
        %301 = vmatpush2.msra.mxu0 %v186
        %302 = vmatprep.subr.mxu0 %v185
        %303 = vmatpush2.msra.mxu0 %v184
        %304 = vmatprep.subr.mxu0 %v183
        %305 = vmatpush2.msra.mxu0 %v182
        %306 = vmatprep.subr.mxu0 %v181
        %307 = vmatpush2.msra.mxu0 %v180
        %308 = vmatprep.mubr.f32.mxu0 %v143
        %309 = vmatmul.mubr.f32.gmra.mxu0 %v142
        %v310 = vpop.f32.mrf.mxu0
        %v311 = vadd.f32 0.0, %v310
        %v312 = vpop.f32.mrf.mxu0
        %v313 = vadd.f32 0.0, %v312
        %314 = vmatprep.mubr.f32.mxu0 %v146
        %315 = vmatmul.mubr.f32.gmra.mxu0 %v145
        %v316 = vpop.f32.mrf.mxu0
        %v317 = vadd.f32 0.0, %v316
        %v318 = vpop.f32.mrf.mxu0
        %v319 = vadd.f32 0.0, %v318
        %320 = vdwg.mxu0
        %321 = vmatprep.subr.mxu0 %v243
        %322 = vmatpush1.msra.mxu0 %v242
        %323 = vmatprep.subr.mxu0 %v241
        %324 = vmatpush1.msra.mxu0 %v240
        %325 = vmatprep.subr.mxu0 %v239
        %326 = vmatpush1.msra.mxu0 %v238
        %327 = vmatprep.subr.mxu0 %v237
        %328 = vmatpush1.msra.mxu0 %v236
        %329 = vmatprep.subr.mxu0 %v235
        %330 = vmatpush1.msra.mxu0 %v234
        %331 = vmatprep.subr.mxu0 %v233
        %332 = vmatpush1.msra.mxu0 %v232
        %333 = vmatprep.subr.mxu0 %v231
        %334 = vmatpush1.msra.mxu0 %v230
        %335 = vmatprep.subr.mxu0 %v229
        %336 = vmatpush1.msra.mxu0 %v228
        %337 = vmatprep.subr.mxu0 %v227
        %338 = vmatpush1.msra.mxu0 %v226
        %339 = vmatprep.subr.mxu0 %v225
        %340 = vmatpush1.msra.mxu0 %v224
        %341 = vmatprep.subr.mxu0 %v223
        %342 = vmatpush1.msra.mxu0 %v222
        %343 = vmatprep.subr.mxu0 %v221
        %344 = vmatpush1.msra.mxu0 %v220
        %345 = vmatprep.subr.mxu0 %v219
        %346 = vmatpush1.msra.mxu0 %v218
        %347 = vmatprep.subr.mxu0 %v217
        %348 = vmatpush1.msra.mxu0 %v216
        %349 = vmatprep.subr.mxu0 %v215
        %350 = vmatpush1.msra.mxu0 %v214
        %351 = vmatprep.subr.mxu0 %v213
        %352 = vmatpush1.msra.mxu0 %v212
        %353 = vmatprep.subr.mxu0 0.0
        %354 = vmatpush2.msra.mxu0 0.0
        %355 = vmatprep.subr.mxu0 0.0
        %356 = vmatpush2.msra.mxu0 0.0
        %357 = vmatprep.subr.mxu0 0.0
        %358 = vmatpush2.msra.mxu0 0.0
        %359 = vmatprep.subr.mxu0 0.0
        %360 = vmatpush2.msra.mxu0 0.0
        %361 = vmatprep.subr.mxu0 0.0
        %362 = vmatpush2.msra.mxu0 0.0
        %363 = vmatprep.subr.mxu0 0.0
        %364 = vmatpush2.msra.mxu0 0.0
        %365 = vmatprep.subr.mxu0 0.0
        %366 = vmatpush2.msra.mxu0 0.0
        %367 = vmatprep.subr.mxu0 0.0
        %368 = vmatpush2.msra.mxu0 0.0
        %369 = vmatprep.subr.mxu0 0.0
        %370 = vmatpush2.msra.mxu0 0.0
        %371 = vmatprep.subr.mxu0 0.0
        %372 = vmatpush2.msra.mxu0 0.0
        %373 = vmatprep.subr.mxu0 0.0
        %374 = vmatpush2.msra.mxu0 0.0
        %375 = vmatprep.subr.mxu0 0.0
        %376 = vmatpush2.msra.mxu0 0.0
        %377 = vmatprep.subr.mxu0 0.0
        %378 = vmatpush2.msra.mxu0 0.0
        %379 = vmatprep.subr.mxu0 0.0
        %380 = vmatpush2.msra.mxu0 0.0
        %381 = vmatprep.subr.mxu0 0.0
        %382 = vmatpush2.msra.mxu0 0.0
        %383 = vmatprep.subr.mxu0 0.0
        %384 = vmatpush2.msra.mxu0 0.0
        %385 = vmatprep.mubr.f32.mxu0 0.0
        %386 = vmatmul.mubr.f32.gmra.mxu0 %v144
        %v387 = vpop.f32.mrf.mxu0
        %v388 = vadd.f32 %v311, %v387
        %v389 = vpop.f32.mrf.mxu0
        %v390 = vadd.f32 %v313, %v389
        %391 = vmatprep.mubr.f32.mxu0 0.0
        %392 = vmatmul.mubr.f32.gmra.mxu0 %v147
        %v393 = vpop.f32.mrf.mxu0
        %v394 = vadd.f32 %v317, %v393
        %v395 = vpop.f32.mrf.mxu0
        %v396 = vadd.f32 %v319, %v395
        %397 = vdwg.mxu0
        %v398 = vmul.f32 %v388, 0.05103104
        %v399 = vmul.f32 %v394, 0.05103104
        %402 = vrot.lane.b32.xlu0 %v388, 64
        %v403 = vpop.permute.xlu0 %402
        %404 = vrot.lane.b32.xlu0 %v394, 64
        %v405 = vpop.permute.xlu0 %404
        %vm406 = vcmask 523264
        %v408 = vsel %vm406, %v398, 0
        %v411 = vsel %vm406, %v399, 0
        %v413 = vsel %vm406, %v403, 0
        %v415 = vsel %vm406, %v405, 0
        %417 = vmatprep.subr.mxu0 0.0
        %418 = vmatpush1.xpose.msra.mxu0 0.0
        %419 = vmatprep.subr.mxu0 0.0
        %420 = vmatpush1.xpose.msra.mxu0 0.0
        %421 = vmatprep.subr.mxu0 0.0
        %422 = vmatpush1.xpose.msra.mxu0 0.0
        %423 = vmatprep.subr.mxu0 0.0
        %424 = vmatpush1.xpose.msra.mxu0 0.0
        %425 = vmatprep.subr.mxu0 0.0
        %426 = vmatpush1.xpose.msra.mxu0 0.0
        %427 = vmatprep.subr.mxu0 0.0
        %428 = vmatpush1.xpose.msra.mxu0 0.0
        %429 = vmatprep.subr.mxu0 0.0
        %430 = vmatpush1.xpose.msra.mxu0 0.0
        %431 = vmatprep.subr.mxu0 0.0
        %432 = vmatpush1.xpose.msra.mxu0 0.0
        %433 = vmatprep.subr.mxu0 0.0
        %434 = vmatpush1.xpose.msra.mxu0 0.0
        %435 = vmatprep.subr.mxu0 0.0
        %436 = vmatpush1.xpose.msra.mxu0 0.0
        %437 = vmatprep.subr.mxu0 0.0
        %438 = vmatpush1.xpose.msra.mxu0 0.0
        %439 = vmatprep.subr.mxu0 0.0
        %440 = vmatpush1.xpose.msra.mxu0 0.0
        %441 = vmatprep.subr.mxu0 0.0
        %442 = vmatpush1.xpose.msra.mxu0 0.0
        %443 = vmatprep.subr.mxu0 0.0
        %444 = vmatpush1.xpose.msra.mxu0 0.0
        %445 = vmatprep.subr.mxu0 0.0
        %446 = vmatpush1.xpose.msra.mxu0 %v415
        %447 = vmatprep.subr.mxu0 0.0
        %448 = vmatpush1.xpose.msra.mxu0 %v413
        %449 = vmatprep.subr.mxu0 0.0
        %450 = vmatpush2.xpose.msra.mxu0 0.0
        %451 = vmatprep.subr.mxu0 0.0
        %452 = vmatpush2.xpose.msra.mxu0 0.0
        %453 = vmatprep.subr.mxu0 0.0
        %454 = vmatpush2.xpose.msra.mxu0 0.0
        %455 = vmatprep.subr.mxu0 0.0
        %456 = vmatpush2.xpose.msra.mxu0 0.0
        %457 = vmatprep.subr.mxu0 0.0
        %458 = vmatpush2.xpose.msra.mxu0 0.0
        %459 = vmatprep.subr.mxu0 0.0
        %460 = vmatpush2.xpose.msra.mxu0 0.0
        %461 = vmatprep.subr.mxu0 0.0
        %462 = vmatpush2.xpose.msra.mxu0 0.0
        %463 = vmatprep.subr.mxu0 0.0
        %464 = vmatpush2.xpose.msra.mxu0 0.0
        %465 = vmatprep.subr.mxu0 0.0
        %466 = vmatpush2.xpose.msra.mxu0 0.0
        %467 = vmatprep.subr.mxu0 0.0
        %468 = vmatpush2.xpose.msra.mxu0 0.0
        %469 = vmatprep.subr.mxu0 0.0
        %470 = vmatpush2.xpose.msra.mxu0 0.0
        %471 = vmatprep.subr.mxu0 0.0
        %472 = vmatpush2.xpose.msra.mxu0 0.0
        %473 = vmatprep.subr.mxu0 0.0
        %474 = vmatpush2.xpose.msra.mxu0 0.0
        %475 = vmatprep.subr.mxu0 0.0
        %476 = vmatpush2.xpose.msra.mxu0 0.0
        %477 = vmatprep.subr.mxu0 0.0
        %478 = vmatpush2.xpose.msra.mxu0 0.0
        %479 = vmatprep.subr.mxu0 0.0
        %480 = vmatpush2.xpose.msra.mxu0 0.0
        %481 = vmatprep.mubr.f32.mxu0 0.0
        %482 = vmatmul.mubr.f32.gmra.mxu0 %v408
        %v483 = vpop.f32.mrf.mxu0
        %v484 = vadd.f32 0.0, %v483
        %v485 = vpop.f32.mrf.mxu0
        %486 = vmatprep.mubr.f32.mxu0 0.0
        %487 = vmatmul.mubr.f32.gmra.mxu0 %v411
        %v488 = vpop.f32.mrf.mxu0
        %v489 = vadd.f32 0.0, %v488
        %v490 = vpop.f32.mrf.mxu0
        %491 = vdwg.mxu0
        %v492 = vlaneseq
        %v493 = vshrl.u32 %v492, 7
        %v494 = vadd.s32 %v493, 8
        %v495 = vlaneseq
        %v496 = vand.u32 %v495, 127
        %vm497 = vcmp.le.s32.totalorder %v496, %v493
        %vm498 = vcmp.le.s32.totalorder %v496, %v494
        %v499 = vsel %vm497, %v484, -inf
        %v500 = vsel %vm498, %v489, -inf
        %vm501 = vcmask 130048
        %v502 = vsel %vm501, %v499, -inf
        %503 = vmax.xlane.f32.xlu0 %v502
        %v504 = vpop.xlane.xlu0 %503
        %v505 = vsel %vm501, %v500, -inf
        %506 = vmax.xlane.f32.xlu0 %v505
        %v507 = vpop.xlane.xlu0 %506
        %v508 = vsub.f32 %v499, %v504
        %v509 = vsub.f32 %v500, %v507
        %v510 = vmul.f32 %v508, 1.442695
        %v511 = vpow.pop %v510
        %v512 = vmul.f32 %v509, 1.442695
        %v513 = vpow.pop %v512
        %v514 = vsel %vm501, %v511, 0.0
        %515 = vadd.xlane.f32.xlu0 %v514
        %v516 = vpop.xlane.xlu0 %515
        %v517 = vsel %vm501, %v513, 0.0
        %518 = vadd.xlane.f32.xlu0 %v517
        %v519 = vpop.xlane.xlu0 %518
        %v520 = vrcp.pop %v516
        %v521 = vrcp.pop %v519
        %v522 = vmul.f32 %v511, %v520
        %v523 = vmul.f32 %v513, %v521
        %v525 = vsel %vm501, %v522, 0
        %v528 = vsel %vm501, %v523, 0
        %530 = vmatprep.subr.mxu0 0.0
        %531 = vmatpush1.msra.mxu0 0.0
        %532 = vmatprep.subr.mxu0 0.0
        %533 = vmatpush1.msra.mxu0 0.0
        %534 = vmatprep.subr.mxu0 0.0
        %535 = vmatpush1.msra.mxu0 0.0
        %536 = vmatprep.subr.mxu0 0.0
        %537 = vmatpush1.msra.mxu0 0.0
        %538 = vmatprep.subr.mxu0 0.0
        %539 = vmatpush1.msra.mxu0 0.0
        %540 = vmatprep.subr.mxu0 0.0
        %541 = vmatpush1.msra.mxu0 0.0
        %542 = vmatprep.subr.mxu0 0.0
        %543 = vmatpush1.msra.mxu0 0.0
        %544 = vmatprep.subr.mxu0 0.0
        %545 = vmatpush1.msra.mxu0 0.0
        %546 = vmatprep.subr.mxu0 0.0
        %547 = vmatpush1.msra.mxu0 0.0
        %548 = vmatprep.subr.mxu0 0.0
        %549 = vmatpush1.msra.mxu0 0.0
        %550 = vmatprep.subr.mxu0 0.0
        %551 = vmatpush1.msra.mxu0 0.0
        %552 = vmatprep.subr.mxu0 0.0
        %553 = vmatpush1.msra.mxu0 0.0
        %554 = vmatprep.subr.mxu0 0.0
        %555 = vmatpush1.msra.mxu0 0.0
        %556 = vmatprep.subr.mxu0 0.0
        %557 = vmatpush1.msra.mxu0 0.0
        %558 = vmatprep.subr.mxu0 0.0
        %559 = vmatpush1.msra.mxu0 %v396
        %560 = vmatprep.subr.mxu0 0.0
        %561 = vmatpush1.msra.mxu0 %v390
        %562 = vmatprep.subr.mxu0 0.0
        %563 = vmatpush2.msra.mxu0 0.0
        %564 = vmatprep.subr.mxu0 0.0
        %565 = vmatpush2.msra.mxu0 0.0
        %566 = vmatprep.subr.mxu0 0.0
        %567 = vmatpush2.msra.mxu0 0.0
        %568 = vmatprep.subr.mxu0 0.0
        %569 = vmatpush2.msra.mxu0 0.0
        %570 = vmatprep.subr.mxu0 0.0
        %571 = vmatpush2.msra.mxu0 0.0
        %572 = vmatprep.subr.mxu0 0.0
        %573 = vmatpush2.msra.mxu0 0.0
        %574 = vmatprep.subr.mxu0 0.0
        %575 = vmatpush2.msra.mxu0 0.0
        %576 = vmatprep.subr.mxu0 0.0
        %577 = vmatpush2.msra.mxu0 0.0
        %578 = vmatprep.subr.mxu0 0.0
        %579 = vmatpush2.msra.mxu0 0.0
        %580 = vmatprep.subr.mxu0 0.0
        %581 = vmatpush2.msra.mxu0 0.0
        %582 = vmatprep.subr.mxu0 0.0
        %583 = vmatpush2.msra.mxu0 0.0
        %584 = vmatprep.subr.mxu0 0.0
        %585 = vmatpush2.msra.mxu0 0.0
        %586 = vmatprep.subr.mxu0 0.0
        %587 = vmatpush2.msra.mxu0 0.0
        %588 = vmatprep.subr.mxu0 0.0
        %589 = vmatpush2.msra.mxu0 0.0
        %590 = vmatprep.subr.mxu0 0.0
        %591 = vmatpush2.msra.mxu0 0.0
        %592 = vmatprep.subr.mxu0 0.0
        %593 = vmatpush2.msra.mxu0 0.0
        %594 = vmatprep.mubr.f32.mxu0 0.0
        %595 = vmatmul.mubr.f32.gmra.mxu0 %v525
        %v596 = vpop.f32.mrf.mxu0
        %v597 = vadd.f32 0.0, %v596
        %v598 = vpop.f32.mrf.mxu0
        %599 = vmatprep.mubr.f32.mxu0 0.0
        %600 = vmatmul.mubr.f32.gmra.mxu0 %v528
        %v601 = vpop.f32.mrf.mxu0
        %v602 = vadd.f32 0.0, %v601
        %v603 = vpop.f32.mrf.mxu0
        %604 = vdwg.mxu0
        %605 = vst.msk [vmem:[%s136] sm:$0xff] %vm406, %v597
        %606 = vst.msk [vmem:[%s136 + $0x8] sm:$0xff] %vm406, %v602
        %s607 = sand.u32 %s71, 1
        %s608 = scalar_lea.sflag [#allocation3], %s607
        %s609 = sand.u32 %s71, 1
        %s610 = smul.addr %s609, 16
        %s611 = scalar_lea.vmem [#allocation2], %s610
        // Predicated region
        $region29: #{tpu_custom_call.1} parent=27 // pred_check
          %p612 = pneg %p81
        $region30: #{tpu_custom_call.1} parent=27 // pred_check_branch
          %614 = sbr.rel (%p612) target = $region32
        $region31: #{tpu_custom_call.1} parent=27 // pred_region
          %s616 = ssub.s32 256, 256
          %617 = vsyncadd %s608, %s616
          %s618 = smul.addr %s16, 2
          %s619 = smul.addr %s618, 128
          %s620 = scalar_lea.hbm %s2, %s619
          %s621 = sshll.u32 %s611, 4
          %s622 = int_to_ptr.vmem [resolvable:$true] %s621
          %627 = dma.vmem_to_hbm [thread:$0]  %s622, 256, %s620, %s608, 128, 128, 8
        $region32: #{tpu_custom_call.1} parent=27 // pred_fallthru
          _
      $region28: #{tpu_custom_call.1} parent=5 // pred_fallthru
        _
      %p628 = scmp.le.s32.totalorder 2, %s11
      // Predicated region
      $region33: #{tpu_custom_call.1} parent=5 // pred_check
        %p629 = pneg %p628
      $region34: #{tpu_custom_call.1} parent=5 // pred_check_branch
        %631 = sbr.rel (%p629) target = $region36
      $region35: #{tpu_custom_call.1} parent=5 // pred_region
        %s632 = ssub.s32 %s11, 2
        // Predicated region
        $region37: #{tpu_custom_call.1} parent=35 // pred_check
          %p633 = pneg %p87
        $region38: #{tpu_custom_call.1} parent=35 // pred_check_branch
          %635 = sbr.rel (%p633) target = $region40
        $region39: #{tpu_custom_call.1} parent=35 // pred_region
          %s636 = sand.u32 %s72, 1
          %s637 = scalar_lea.sflag [#allocation3], %s636
          %s638 = sand.u32 %s72, 1
          %s639 = smul.addr %s638, 16
          %s640 = scalar_lea.vmem [#allocation2], %s639
          %641 = dma.done %s637, 256
        $region40: #{tpu_custom_call.1} parent=35 // pred_fallthru
          _
      $region36: #{tpu_custom_call.1} parent=5 // pred_fallthru
        _
    $region6: #{tpu_custom_call.1} parent=1 // loop_footer
      %s15 = sadd.s32 1, %s11
    $region7: #{tpu_custom_call.1} parent=1 // loop_footer_branch
      %10 = sbr.rel target = $region3
    $region8: #{tpu_custom_call.1} parent=1 // loop_exit
      _
    %642 = vsyncpa [#allocation3], 1
    %s643 = scalar_lea.sflag [#allocation3], 1
    %644 = vsyncpa %s643, 1

</llo_original>
